<compile_context>
chip_gen: v5e
topology: v5e:2x2
jax: 0.10.0
libtpu: 0.0.40
codegen_flags: <defaults>
</compile_context>

<pallas_src>
import functools

import jax
import jax.numpy as jnp
from jax import lax
from jax.experimental import pallas as pl
from jax.experimental.pallas import tpu as pltpu


# ----------------------------- kernels -------------------------------------


def _pe_add_kernel(x_ref, pe_ref, o_ref, *, block_b, d_model):
    """Eval-mode forward: out = x + pe (pe broadcast over the batch axis).

    x_ref/o_ref: (bs, block_b * d_model) lane-dense slab, pe_ref: (bs, d_model).
    The batch broadcast is `block_b` unrolled slice-adds (no concat temporary).
    """
    pe = pe_ref[...]
    for b in range(block_b):
        sl = slice(b * d_model, (b + 1) * d_model)
        o_ref[:, sl] = x_ref[:, sl] + pe


def _pe_add_dropout_hw_kernel(seed_ref, x_ref, pe_ref, o_ref, *,
                              block_b, d_model, p):
    """Training-mode forward using the TPU hardware PRNG.

    One uint32 draw yields two independent 16-bit keep decisions (lower/upper
    halves), halving PRNG volume vs 32 bits per element.  Keep-prob is quantized
    to 1/65536 granularity (negligible for typical p).
    """
    # Seed mixes the user seed with both grid coordinates -> independent streams
    # per block and no trivial cross-call collisions.
    pltpu.prng_seed(seed_ref[0], pl.program_id(0), pl.program_id(1))
    thresh16 = jnp.int32(min(max(int(round(p * 65536.0)), 0), 65535))
    scale = jnp.float32(1.0 / (1.0 - p))          # exact f32 scale (no bf16 rounding)
    pe = pe_ref[...].astype(jnp.float32)
    bs = x_ref.shape[0]

    for b0 in range(0, block_b, 2):
        bits = pltpu.prng_random_bits((bs, d_model))
        if bits.dtype != jnp.uint32:
            bits = pltpu.bitcast(bits, jnp.uint32)
        halves = ((b0, bits & jnp.uint32(0xFFFF)), (b0 + 1, bits >> 16))
        for b, half in halves:
            if b >= block_b:
                continue
            keep = half.astype(jnp.int32) >= thresh16
            sl = slice(b * d_model, (b + 1) * d_model)
            y = (x_ref[:, sl].astype(jnp.float32) + pe) * scale
            o_ref[:, sl] = jnp.where(keep, y, 0.0).astype(o_ref.dtype)


def _pe_add_dropout_hash_kernel(seed_ref, x_ref, pe_ref, o_ref, *,
                                block_b, d_model, total_width, p):
    """Training-mode forward with a portable counter-based hash mask.

    Used when the backend is not a real TPU (e.g. Pallas interpret mode on CPU,
    where pltpu.prng_seed has no lowering).  mask = lowbias32(global_index, seed).
    """
    bs = x_ref.shape[0]
    row_off = pl.program_id(0) * bs
    col_off = pl.program_id(1) * (block_b * d_model)

    thresh = jnp.int32(min(max(int(round(p * 2147483648.0)), 0), 2147483647))
    scale = jnp.float32(1.0 / (1.0 - p))

    seed_term = seed_ref[0].astype(jnp.uint32) * jnp.uint32(2654435761)
    shape = (bs, d_model)
    rows = lax.broadcasted_iota(jnp.int32, shape, 0) + row_off
    cols = lax.broadcasted_iota(jnp.int32, shape, 1) + col_off
    row_term = rows.astype(jnp.uint32) * jnp.uint32(total_width % (1 << 32))
    col_base = cols.astype(jnp.uint32)

    pe = pe_ref[...].astype(jnp.float32)
    for b in range(block_b):
        h = row_term + (col_base + jnp.uint32(b * d_model)) + seed_term
        h = h ^ (h >> 16)
        h = h * jnp.uint32(0x7FEB352D)
        h = h ^ (h >> 15)
        h = h * jnp.uint32(0x846CA68B)
        h = h ^ (h >> 16)
        keep = (h >> 1).astype(jnp.int32) >= thresh       # uniform int31 >= p*2^31
        sl = slice(b * d_model, (b + 1) * d_model)
        y = (x_ref[:, sl].astype(jnp.float32) + pe) * scale
        o_ref[:, sl] = jnp.where(keep, y, 0.0).astype(o_ref.dtype)


# ----------------------------- wrapper --------------------------------------


def _default_vmem_limit():
    """~70% of physical VMEM (headroom on v7x's 64 MiB); 44 MiB off-TPU fallback."""
    try:
        cap = int(pltpu.get_tpu_info().vmem_capacity_bytes)
        return max(32 << 20, min(int(cap * 0.7), 96 << 20))
    except Exception:
        return 44 << 20


def _choose_blocks(S, B, D, itemsize, target_bytes):
    """Pick (block_seq, block_b) so one x tile is ~target_bytes.

    * Prefer tiling the sequence axis only (cheapest; pe tile stays small).
    * If even an 8-row tile of a full B*D row exceeds the budget and D % 128 == 0,
      additionally tile the flattened batch axis (lane blocks stay 128-aligned);
      in-kernel unroll is capped at 64 batch slices per block.
    * Ensure >= 2 sequence blocks when S > 8 so the "parallel" grid can be split
      across v7x's two TensorCores.
    """
    row_bytes = B * D * itemsize
    if D % 128 == 0 and 8 * row_bytes > target_bytes:
        bs = 8 if S >= 8 else S
        bb = max(1, target_bytes // (8 * D * itemsize))
        return bs, int(min(bb, B, 64))

    rows = int(target_bytes // max(1, row_bytes))
    if rows >= S:
        if S > 8:
            half = (S + 1) // 2
            rows = min(((half + 7) // 8) * 8, S)   # split for megacore when possible
        else:
            rows = S
    else:
        rows = min(max(8, (rows // 8) * 8), S)
    return rows, B


def learnable_positional_encoding(x, pe, *, dropout_p=0.1, training=False,
                                  seed=0, block_seq=None, block_b=None,
                                  vmem_limit_bytes=None, use_hw_prng=None):
    """x: (S, B, D), pe: (max_len, D).  Returns dropout(x + pe[:S, None, :])."""
    S, B, D = x.shape
    use_dropout = bool(training) and dropout_p > 0.0
    if use_dropout and dropout_p >= 1.0:
        return jnp.zeros_like(x)          # degenerate p == 1: everything dropped

    pe_s = pe[:S].astype(x.dtype)         # static slice, pre-cast (halves pe DMA for bf16)
    x2 = x.reshape(S, B * D)              # free contiguous reshape -> lane-dense slab
    # NOTE: for tiny B*D (< 128 lanes, as in the toy config below) the slab
    # under-fills vregs; acceptable since the whole tensor is tiny.

    target = (2 << 20) if use_dropout else (4 << 20)   # dropout body has more live temporaries
    bs, bb = _choose_blocks(S, B, D, x.dtype.itemsize, target)
    if block_seq is not None:
        bs = block_seq
    if block_b is not None:
        bb = block_b
    width = bb * D
    grid = (pl.cdiv(S, bs), pl.cdiv(B, bb))

    if vmem_limit_bytes is None:
        vmem_limit_bytes = _default_vmem_limit()
    cparams = pltpu.CompilerParams(
        dimension_semantics=("parallel", "parallel"),
        vmem_limit_bytes=vmem_limit_bytes,
    )

    # index_maps take (*grid_idx, *scalar_prefetch_refs); `*_` accepts both arities.
    x_spec = pl.BlockSpec((bs, width), lambda i, j, *_: (i, j))
    pe_spec = pl.BlockSpec((bs, D), lambda i, j, *_: (i, 0))
    out_spec = pl.BlockSpec((bs, width), lambda i, j, *_: (i, j))
    out_shape = jax.ShapeDtypeStruct((S, B * D), x.dtype)

    if not use_dropout:
        out2 = pl.pallas_call(
            functools.partial(_pe_add_kernel, block_b=bb, d_model=D),
            out_shape=out_shape,
            grid_spec=pltpu.PrefetchScalarGridSpec(
                num_scalar_prefetch=0, grid=grid,
                in_specs=[x_spec, pe_spec], out_specs=out_spec),
            input_output_aliases={0: 0},            # reuse x's buffer for the output
            compiler_params=cparams,
        )(x2, pe_s)
    else:
        if use_hw_prng is None:
            use_hw_prng = jax.default_backend() == "tpu"
        if use_hw_prng:
            kernel = functools.partial(_pe_add_dropout_hw_kernel,
                                       block_b=bb, d_model=D, p=float(dropout_p))
        else:
            kernel = functools.partial(_pe_add_dropout_hash_kernel,
                                       block_b=bb, d_model=D,
                                       total_width=B * D, p=float(dropout_p))
        seed_arr = jnp.asarray([seed], dtype=jnp.int32)
        out2 = pl.pallas_call(
            kernel,
            out_shape=out_shape,
            grid_spec=pltpu.PrefetchScalarGridSpec(
                num_scalar_prefetch=1, grid=grid,
                in_specs=[x_spec, pe_spec], out_specs=out_spec),
            input_output_aliases={1: 0},            # x2 is arg index 1 (after the seed)
            compiler_params=cparams,
        )(seed_arr, x2, pe_s)

    return out2.reshape(S, B, D)  # free reshape back to (S, B, D)


# ----------------------------- main ------------------------------------------


if __name__ == "__main__":
    d_model = 32
    max_len = 64
    seq_len = 8
    batch = 2
    dropout_p = 0.1

    key = jax.random.PRNGKey(0)
    k_pe, k_x = jax.random.split(key)

    # Deterministic parameter init matching nn.init.normal_(pe, mean=0, std=0.02)
    pe = (0.02 * jax.random.normal(k_pe, (max_len, d_model))).astype(jnp.float32)
    x = jax.random.normal(k_x, (seq_len, batch, d_model), dtype=jnp.float32)

    ref = x + pe[:seq_len][:, None, :]

    # Eval-mode forward (dropout == identity): check against pure-JAX reference.
    out = learnable_positional_encoding(x, pe, dropout_p=dropout_p, training=False)
    out = jax.block_until_ready(out)
    assert out.shape == x.shape and out.dtype == x.dtype
    assert jnp.allclose(out, ref, atol=1e-6, rtol=1e-6), "eval-mode mismatch"

    # Training-mode forward (inverted dropout inside the kernel); kept positions
    # must equal ref / (1 - p).
    out_tr = learnable_positional_encoding(
        x, pe, dropout_p=dropout_p, training=True, seed=1234)
    out_tr = jax.block_until_ready(out_tr)
    kept = out_tr != 0.0
    scale = 1.0 / (1.0 - dropout_p)
    assert jnp.allclose(jnp.where(kept, out_tr, 0.0),
                        jnp.where(kept, ref * scale, 0.0),
                        atol=1e-5, rtol=1e-5), "training-mode kept-value mismatch"

    print("KERNEL_OK")
</pallas_src>

<mosaic_0001>
module attributes {stable_mosaic.version = 11 : i64} {
  func.func @_pe_add_kernel(%arg0: i32, %arg1: i32, %arg2: memref<8x64xf32, #tpu.memory_space<vmem>>, %arg3: memref<8x32xf32, #tpu.memory_space<vmem>>, %arg4: memref<8x64xf32, #tpu.memory_space<vmem>>) attributes {dimension_semantics = [#tpu.dimension_semantics<parallel>, #tpu.dimension_semantics<parallel>], iteration_bounds = array<i64: 1, 1>, scalar_prefetch = 0 : i64, scratch_operands = 0 : i64, tpu.core_type = #tpu.core_type<tc>, window_params = [{transform_indices = @transform_0, window_bounds = array<i64: 8, 64>}, {transform_indices = @transform_1, window_bounds = array<i64: 8, 32>}, {transform_indices = @transform_2, window_bounds = array<i64: 8, 64>}]} {
    %c0 = arith.constant 0 : index
    %c0_0 = arith.constant 0 : index
    %0 = vector.load %arg3[%c0, %c0_0] : memref<8x32xf32, #tpu.memory_space<vmem>>, vector<8x32xf32>
    %c0_1 = arith.constant 0 : index
    %c0_2 = arith.constant 0 : index
    %1 = vector.load %arg2[%c0_1, %c0_2] : memref<8x64xf32, #tpu.memory_space<vmem>>, vector<8x32xf32>
    %2 = arith.addf %1, %0 : vector<8x32xf32>
    %c0_3 = arith.constant 0 : index
    %c0_4 = arith.constant 0 : index
    %3 = vector.load %arg4[%c0_3, %c0_4] : memref<8x64xf32, #tpu.memory_space<vmem>>, vector<8x32xf32>
    tpu.vector_store %arg4[%c0_3, %c0_4], %2 {strides = array<i32>} : memref<8x64xf32, #tpu.memory_space<vmem>>, vector<8x32xf32>,
    %c0_5 = arith.constant 0 : index
    %c32 = arith.constant 32 : index
    %4 = vector.load %arg2[%c0_5, %c32] : memref<8x64xf32, #tpu.memory_space<vmem>>, vector<8x32xf32>
    %5 = arith.addf %4, %0 : vector<8x32xf32>
    %c0_6 = arith.constant 0 : index
    %c32_7 = arith.constant 32 : index
    %6 = vector.load %arg4[%c0_6, %c32_7] : memref<8x64xf32, #tpu.memory_space<vmem>>, vector<8x32xf32>
    tpu.vector_store %arg4[%c0_6, %c32_7], %5 {strides = array<i32>} : memref<8x64xf32, #tpu.memory_space<vmem>>, vector<8x32xf32>,
    return
  }
  func.func @transform_0(%arg0: i32, %arg1: i32) -> (i32, i32) {
    %c0_i32 = arith.constant 0 : i32
    return %arg0, %arg1 : i32, i32
  }
  func.func @transform_1(%arg0: i32, %arg1: i32) -> (i32, i32) {
    %c0_i32 = arith.constant 0 : i32
    %c0_i32_0 = arith.constant 0 : i32
    return %arg0, %c0_i32 : i32, i32
  }
  func.func @transform_2(%arg0: i32, %arg1: i32) -> (i32, i32) {
    %c0_i32 = arith.constant 0 : i32
    return %arg0, %arg1 : i32, i32
  }
}

</mosaic_0001>

<llo_original>
// kernel: tpu_custom_call.1
$region0: #{tpu_custom_call.1}
  #allocation0 [shape = 'u32[]', space=smem, size = 0x4, offset = 0x4, fixed_abs, tag = 'smem constant byte address 0x4 - core index']
  #allocation1 [shape = 'u32[72,128]{1,0:T(1,128)}', space=vmem, size = 0x9000, scoped, tag = 'internal scratch']
  %s0 = inlined_call_operand.hbm [shape: f32[8,64], index: 0, kind: input, shape index: {}, may-alias: {0,2}]
  %s1 = inlined_call_operand.vmem [shape: f32[8,32], index: 1, kind: input, shape index: {}]
  %s2 = inlined_call_operand.hbm [shape: f32[8,64], index: 2, kind: output, shape index: {}, may-alias: {0,2}]
  %s3 = sld [smem:[#allocation0]]
  $region22: #{tpu_custom_call.1} parent=0
    _
  %s5 = ssub.s32 1, %s3
  %s6 = scalar_select 0, %s5, %s3
  $region1: #{tpu_custom_call.1} parent=0
    #allocation2 [shape = 'u8[4096]{0}', space=vmem, size = 0x1000, scoped, tag = 'input window, operand 0, single buffered']
    #allocation3 [shape = 's32[1]{0}', space=sflag, size = 0x4, scoped, tag = 'scoped memory for tpu_custom_call.1']
    #allocation4 [shape = 's32[1]{0}', space=sflag, size = 0x4, scoped, tag = 'scoped memory for tpu_custom_call.1']
    #allocation5 [shape = 'u8[4096]{0}', space=vmem, size = 0x1000, scoped, tag = 'output window, operand 0, single buffered']
    %7 = vsyncpa [#allocation3], 0
    %8 = vsyncpa [#allocation4], 0
    // Predicated region
    $region2: #{tpu_custom_call.1} parent=1 // pred_check
      _
    $region3: #{tpu_custom_call.1} parent=1 // pred_check_branch
      %10 = sbr.rel (0) target = $region5
    $region4: #{tpu_custom_call.1} parent=1 // pred_region
      %12 = vsyncadd [#allocation3], 0
      %s14 = sshll.u32 %s0, 4
      %s15 = int_to_ptr.hbm [resolvable:$true] %s14
      %s16 = sshll.u32 [#allocation2], 4
      %s17 = int_to_ptr.vmem [resolvable:$true] %s16
      %19 = dma.hbm_to_vmem [thread:$0]  %s15, 128, %s17, [#allocation3]
    $region5: #{tpu_custom_call.1} parent=1 // pred_fallthru
      _
    // Predicated region
    $region6: #{tpu_custom_call.1} parent=1 // pred_check
      _
    $region7: #{tpu_custom_call.1} parent=1 // pred_check_branch
      %21 = sbr.rel (0) target = $region9
    $region8: #{tpu_custom_call.1} parent=1 // pred_region
      _
    $region9: #{tpu_custom_call.1} parent=1 // pred_fallthru
      _
    // Predicated region
    $region10: #{tpu_custom_call.1} parent=1 // pred_check
      _
    $region11: #{tpu_custom_call.1} parent=1 // pred_check_branch
      %23 = sbr.rel (0) target = $region13
    $region12: #{tpu_custom_call.1} parent=1 // pred_region
      %25 = dma.done [#allocation3], 128
    $region13: #{tpu_custom_call.1} parent=1 // pred_fallthru
      _
    %v26 = vld [vmem:[%s1] sm:$0xff]
    %v27 = vld [vmem:[#allocation2] sm:$0xff]
    %v28 = vadd.f32 %v27, %v26
    %vm29 = vcmask 261120
    %30 = vst.msk [vmem:[#allocation5] sm:$0xff] %vm29, %v28
    %v31 = vld [vmem:[#allocation2] sm:$0xff]
    %33 = vrot.lane.b32.xlu0 %v26, 32
    %v34 = vpop.permute.xlu0 %33
    %v36 = vadd.f32 %v31, %v34
    %vm37 = vcmask 523520
    %38 = vst.msk [vmem:[#allocation5] sm:$0xff] %vm37, %v36
    // Predicated region
    $region14: #{tpu_custom_call.1} parent=1 // pred_check
      _
    $region15: #{tpu_custom_call.1} parent=1 // pred_check_branch
      %40 = sbr.rel (0) target = $region17
    $region16: #{tpu_custom_call.1} parent=1 // pred_region
      %42 = vsyncadd [#allocation4], 0
      %s44 = sshll.u32 [#allocation5], 4
      %s45 = int_to_ptr.vmem [resolvable:$true] %s44
      %s46 = sshll.u32 %s2, 4
      %s47 = int_to_ptr.hbm [resolvable:$true] %s46
      %49 = dma.vmem_to_hbm [thread:$0]  %s45, 128, %s47, [#allocation4]
    $region17: #{tpu_custom_call.1} parent=1 // pred_fallthru
      _
    // Predicated region
    $region18: #{tpu_custom_call.1} parent=1 // pred_check
      _
    $region19: #{tpu_custom_call.1} parent=1 // pred_check_branch
      %51 = sbr.rel (0) target = $region21
    $region20: #{tpu_custom_call.1} parent=1 // pred_region
      %53 = dma.done [#allocation4], 128
    $region21: #{tpu_custom_call.1} parent=1 // pred_fallthru
      _
    %54 = vsyncpa [#allocation3], 1
    %55 = vsyncpa [#allocation4], 1

</llo_original>
